<compile_context>
chip_gen: v7x
topology: tpu7x:2x2x1
jax: 0.10.0
libtpu: 0.0.40
codegen_flags: <defaults>
</compile_context>

<pallas_src>
import jax
import jax.numpy as jnp
from jax.experimental import pallas as pl
from jax.experimental.pallas import tpu as pltpu

LANE = 128
SUBLANE = 8
BN_EPS = 1e-5  # PyTorch BatchNorm1d default


def _round_up(x, m):
    return -(-x // m) * m


def _fused_mlp_kernel(x_ref, s_ref, *wrefs_and_out):
    """Fused MLP: y = sigmoid(relu(...relu(x@W0'+s0)...)@W_last'+s_last).

    wrefs_and_out = (w0, w1, ..., w_{n-1}, o_ref); weights are bf16 with BN
    scale folded in; s_ref packs all f32 shifts as rows of a (n_layers, D_max)
    array (shift = bias*scale + beta - mean*scale).
    """
    o_ref = wrefs_and_out[-1]
    wrefs = wrefs_and_out[:-1]
    n = len(wrefs)
    y = x_ref[...]
    for i in range(n):
        do = wrefs[i].shape[1]
        w = wrefs[i][...]                     # bf16, VMEM-resident across grid
        s = s_ref[i : i + 1, :do]             # (1, do) f32 shift
        y = jnp.dot(y.astype(jnp.bfloat16), w,
                    preferred_element_type=jnp.float32) + s
        if i < n - 1:
            y = jnp.maximum(y, 0.0)           # ReLU (Dropout = identity, eval)
        else:
            y = jax.nn.sigmoid(y)             # final Sigmoid
    o_ref[...] = y.astype(o_ref.dtype)


def fold_params(raw_params):
    """Fold eval-mode BatchNorm1d + Linear bias into (W', shift'), in f32.

    raw_params: list of (w, b, gamma, beta, running_mean, running_var) with
    w shaped (in_features, out_features) and all vectors shaped (1, out_features).
    """
    folded = []
    for w, b, gamma, beta, mean, var in raw_params:
        scale = gamma / jnp.sqrt(var + BN_EPS)
        w_f = w * scale                            # column-wise scale
        shift = b * scale + (beta - mean * scale)
        folded.append((w_f, shift))
    return folded


def prepare_params(raw_params, weight_dtype=jnp.bfloat16):
    """Fold (f32), lane-pad hidden dims to multiples of 128, pack shifts, cast W to bf16."""
    folded = fold_params(raw_params)
    n = len(folded)
    ws, shifts, dos = [], [], []
    for i, (w, s) in enumerate(folded):
        do = w.shape[1]
        last = i == n - 1
        do_pad = do if last else _round_up(do, LANE)   # keep true out_dim on last
        if do_pad != do:
            w = jnp.pad(w, ((0, 0), (0, do_pad - do)))
            s = jnp.pad(s, ((0, 0), (0, do_pad - do)))
        ws.append(w)
        shifts.append(s)
        dos.append(do_pad)
    # Pad input rows of layer i to match layer i-1's padded width (zeros).
    for i in range(1, n):
        di = ws[i].shape[0]
        di_pad = dos[i - 1]
        if di_pad != di:
            ws[i] = jnp.pad(ws[i], ((0, di_pad - di), (0, 0)))
    d_max = max(dos)
    shift_mat = jnp.concatenate(
        [jnp.pad(s, ((0, 0), (0, d_max - s.shape[1]))) for s in shifts], axis=0
    ).astype(jnp.float32)                               # shifts stay f32
    ws = [w.astype(weight_dtype) for w in ws]
    return ws, shift_mat


def baseline_network_forward(x, ws, shift_mat, *, block_b=512):
    """Fused forward pass. x: (B, Din) float32. Returns (B, out_dim) float32."""
    B, Din = x.shape
    n_layers = len(ws)
    out_dim = ws[-1].shape[1]
    d_max = shift_mat.shape[1]

    # Batch-tile selection: big tiles amortize the ~0.35us/step overhead, but
    # keep >= 2 grid steps when the batch allows it (v7x: 2 TensorCores).
    bb = min(block_b, _round_up(max(B, 1), SUBLANE))
    if _round_up(B, SUBLANE) >= 2 * SUBLANE:
        bb = min(bb, _round_up(-(-B // 2), SUBLANE))
    Bp = _round_up(B, bb)
    xp = jnp.pad(x, ((0, Bp - B), (0, 0))) if Bp != B else x

    flat_inputs = [xp, shift_mat] + list(ws)
    in_specs = [
        pl.BlockSpec((bb, Din), lambda i: (i, 0)),
        # Constant index_map + single-buffering: fetched once, VMEM-resident.
        pl.BlockSpec((n_layers, d_max), lambda i: (0, 0),
                     pipeline_mode=pl.Buffered(1)),
    ]
    for w in ws:
        di, do = w.shape
        in_specs.append(
            pl.BlockSpec((di, do), lambda i: (0, 0),
                         pipeline_mode=pl.Buffered(1))
        )

    # Explicit VMEM budget: single-buffered weights + shifts, double-buffered
    # x/out tiles, plus slack for the live activation chain.
    weight_bytes = sum(int(w.size) * w.dtype.itemsize for w in ws)
    vmem_needed = (
        weight_bytes
        + int(shift_mat.size) * 4
        + 2 * bb * Din * 4
        + 2 * bb * out_dim * 4
        + 4 * bb * d_max * 4
    )
    vmem_limit = int(min(max(2 * vmem_needed, 32 << 20), 100 << 20))

    out = pl.pallas_call(
        _fused_mlp_kernel,
        out_shape=jax.ShapeDtypeStruct((Bp, out_dim), jnp.float32),
        grid=(Bp // bb,),
        in_specs=in_specs,
        out_specs=pl.BlockSpec((bb, out_dim), lambda i: (i, 0)),
        compiler_params=pltpu.CompilerParams(
            dimension_semantics=("parallel",),
            vmem_limit_bytes=vmem_limit,
        ),
    )(*flat_inputs)
    return out if Bp == B else out[:B]


def init_params(key, layer_dims):
    """Deterministic synthetic parameters matching BaselineNetwork's shapes."""
    params = []
    for in_, out_ in zip(layer_dims[:-1], layer_dims[1:]):
        key, k_w, k_b, k_g, k_be, k_m, k_v = jax.random.split(key, 7)
        bound = 1.0 / jnp.sqrt(in_)
        w = jax.random.uniform(k_w, (in_, out_), jnp.float32, -bound, bound)
        b = jax.random.uniform(k_b, (1, out_), jnp.float32, -bound, bound)
        gamma = 1.0 + 0.1 * jax.random.normal(k_g, (1, out_), jnp.float32)
        beta = 0.1 * jax.random.normal(k_be, (1, out_), jnp.float32)
        run_mean = 0.1 * jax.random.normal(k_m, (1, out_), jnp.float32)
        run_var = 0.5 + jnp.abs(jax.random.normal(k_v, (1, out_), jnp.float32))
        params.append((w, b, gamma, beta, run_mean, run_var))
    return params


def baseline_network_ref(x, raw_params):
    """Plain-JAX f32 reference (un-folded BN) of the same forward pass."""
    n = len(raw_params)
    for i, (w, b, gamma, beta, mean, var) in enumerate(raw_params):
        y = x @ w + b
        y = (y - mean) / jnp.sqrt(var + BN_EPS) * gamma + beta
        x = jax.nn.sigmoid(y) if i == n - 1 else jnp.maximum(y, 0.0)
    return x


if __name__ == "__main__":
    key = jax.random.PRNGKey(0)
    layer_dims = [32, 64, 32, 1]   # small synthetic MLP
    batch = 8

    key, k_x, k_p = jax.random.split(key, 3)
    x = jax.random.normal(k_x, (batch, layer_dims[0]), jnp.float32)
    raw_params = init_params(k_p, layer_dims)
    ws, shift_mat = prepare_params(raw_params)

    out = baseline_network_forward(x, ws, shift_mat)
    out = jax.block_until_ready(out)

    ref = baseline_network_ref(x, raw_params)
    assert out.shape == (batch, layer_dims[-1])
    # bf16 MXU inputs widen error vs the f32 reference; 2e-2 abs is ample for
    # sigmoid outputs in [0, 1].
    assert jnp.allclose(out, ref, atol=2e-2, rtol=2e-2), (
        float(jnp.max(jnp.abs(out - ref)))
    )

    print("KERNEL_OK")
</pallas_src>

<mosaic_0001>
module attributes {stable_mosaic.version = 11 : i64} {
  func.func @_fused_mlp_kernel(%arg0: i32, %arg1: memref<8x32xf32, #tpu.memory_space<vmem>>, %arg2: memref<3x128xf32, #tpu.memory_space<vmem>>, %arg3: memref<32x128xbf16, #tpu.memory_space<vmem>>, %arg4: memref<128x128xbf16, #tpu.memory_space<vmem>>, %arg5: memref<128x1xbf16, #tpu.memory_space<vmem>>, %arg6: memref<8x1xf32, #tpu.memory_space<vmem>>) attributes {dimension_semantics = [#tpu.dimension_semantics<parallel>], iteration_bounds = array<i64: 1>, scalar_prefetch = 0 : i64, scratch_operands = 0 : i64, tpu.core_type = #tpu.core_type<tc>, window_params = [{transform_indices = @transform_0, window_bounds = array<i64: 8, 32>}, {pipeline_mode = #tpu.pipeline_mode<synchronous>, transform_indices = @transform_1, window_bounds = array<i64: 3, 128>}, {pipeline_mode = #tpu.pipeline_mode<synchronous>, transform_indices = @transform_2, window_bounds = array<i64: 32, 128>}, {pipeline_mode = #tpu.pipeline_mode<synchronous>, transform_indices = @transform_3, window_bounds = array<i64: 128, 128>}, {pipeline_mode = #tpu.pipeline_mode<synchronous>, transform_indices = @transform_4, window_bounds = array<i64: 128, 1>}, {transform_indices = @transform_5, window_bounds = array<i64: 8, 1>}]} {
    %c0 = arith.constant 0 : index
    %c0_0 = arith.constant 0 : index
    %0 = vector.load %arg1[%c0, %c0_0] : memref<8x32xf32, #tpu.memory_space<vmem>>, vector<8x32xf32>
    %c0_1 = arith.constant 0 : index
    %c0_2 = arith.constant 0 : index
    %1 = vector.load %arg3[%c0_1, %c0_2] : memref<32x128xbf16, #tpu.memory_space<vmem>>, vector<32x128xbf16>
    %c0_3 = arith.constant 0 : index
    %c0_4 = arith.constant 0 : index
    %2 = vector.load %arg2[%c0_3, %c0_4] : memref<3x128xf32, #tpu.memory_space<vmem>>, vector<1x128xf32>
    %3 = arith.truncf %0 : vector<8x32xf32> to vector<8x32xbf16>
    %cst = arith.constant dense<0.000000e+00> : vector<8x128xf32>
    %4 = tpu.matmul %3, %1, %cst {dimension_numbers = #tpu.dot_dimension_numbers<[1], [0], [0], [1], [0, 0, 1, 1], [], []>} : vector<8x32xbf16>, vector<32x128xbf16>, vector<8x128xf32> -> vector<8x128xf32>
    %5 = vector.broadcast %2 : vector<1x128xf32> to vector<8x128xf32>
    %6 = arith.addf %4, %5 : vector<8x128xf32>
    %cst_5 = arith.constant 0.000000e+00 : f32
    %7 = vector.broadcast %cst_5 : f32 to vector<8x128xf32>
    %8 = arith.maximumf %6, %7 : vector<8x128xf32>
    %c0_6 = arith.constant 0 : index
    %c0_7 = arith.constant 0 : index
    %9 = vector.load %arg4[%c0_6, %c0_7] : memref<128x128xbf16, #tpu.memory_space<vmem>>, vector<128x128xbf16>
    %c1 = arith.constant 1 : index
    %c0_8 = arith.constant 0 : index
    %10 = vector.load %arg2[%c1, %c0_8] : memref<3x128xf32, #tpu.memory_space<vmem>>, vector<1x128xf32>
    %11 = arith.truncf %8 : vector<8x128xf32> to vector<8x128xbf16>
    %cst_9 = arith.constant dense<0.000000e+00> : vector<8x128xf32>
    %12 = tpu.matmul %11, %9, %cst_9 {dimension_numbers = #tpu.dot_dimension_numbers<[1], [0], [0], [1], [0, 0, 1, 1], [], []>} : vector<8x128xbf16>, vector<128x128xbf16>, vector<8x128xf32> -> vector<8x128xf32>
    %13 = vector.broadcast %10 : vector<1x128xf32> to vector<8x128xf32>
    %14 = arith.addf %12, %13 : vector<8x128xf32>
    %cst_10 = arith.constant 0.000000e+00 : f32
    %15 = vector.broadcast %cst_10 : f32 to vector<8x128xf32>
    %16 = arith.maximumf %14, %15 : vector<8x128xf32>
    %c0_11 = arith.constant 0 : index
    %c0_12 = arith.constant 0 : index
    %17 = vector.load %arg5[%c0_11, %c0_12] : memref<128x1xbf16, #tpu.memory_space<vmem>>, vector<128x1xbf16>
    %c2 = arith.constant 2 : index
    %c0_13 = arith.constant 0 : index
    %18 = vector.load %arg2[%c2, %c0_13] : memref<3x128xf32, #tpu.memory_space<vmem>>, vector<1x1xf32>
    %19 = arith.truncf %16 : vector<8x128xf32> to vector<8x128xbf16>
    %cst_14 = arith.constant dense<0.000000e+00> : vector<8x1xf32>
    %20 = tpu.matmul %19, %17, %cst_14 {dimension_numbers = #tpu.dot_dimension_numbers<[1], [0], [0], [1], [0, 0, 1, 1], [], []>} : vector<8x128xbf16>, vector<128x1xbf16>, vector<8x1xf32> -> vector<8x1xf32>
    %21 = vector.broadcast %18 : vector<1x1xf32> to vector<8x1xf32>
    %22 = arith.addf %20, %21 : vector<8x1xf32>
    %23 = arith.negf %22 : vector<8x1xf32>
    %24 = math.exp %23 : vector<8x1xf32>
    %cst_15 = arith.constant 1.000000e+00 : f32
    %25 = vector.broadcast %cst_15 : f32 to vector<8x1xf32>
    %26 = arith.addf %25, %24 : vector<8x1xf32>
    %27 = arith.divf %25, %26 : vector<8x1xf32>
    %c0_16 = arith.constant 0 : index
    %c0_17 = arith.constant 0 : index
    %28 = vector.load %arg6[%c0_16, %c0_17] : memref<8x1xf32, #tpu.memory_space<vmem>>, vector<8x1xf32>
    tpu.vector_store %arg6[%c0_16, %c0_17], %27 {strides = array<i32>} : memref<8x1xf32, #tpu.memory_space<vmem>>, vector<8x1xf32>,
    return
  }
  func.func @transform_0(%arg0: i32) -> (i32, i32) {
    %c0_i32 = arith.constant 0 : i32
    %c0_i32_0 = arith.constant 0 : i32
    return %arg0, %c0_i32 : i32, i32
  }
  func.func @transform_1(%arg0: i32) -> (i32, i32) {
    %c0_i32 = arith.constant 0 : i32
    %c0_i32_0 = arith.constant 0 : i32
    %c0_i32_1 = arith.constant 0 : i32
    return %c0_i32, %c0_i32_0 : i32, i32
  }
  func.func @transform_2(%arg0: i32) -> (i32, i32) {
    %c0_i32 = arith.constant 0 : i32
    %c0_i32_0 = arith.constant 0 : i32
    %c0_i32_1 = arith.constant 0 : i32
    return %c0_i32, %c0_i32_0 : i32, i32
  }
  func.func @transform_3(%arg0: i32) -> (i32, i32) {
    %c0_i32 = arith.constant 0 : i32
    %c0_i32_0 = arith.constant 0 : i32
    %c0_i32_1 = arith.constant 0 : i32
    return %c0_i32, %c0_i32_0 : i32, i32
  }
  func.func @transform_4(%arg0: i32) -> (i32, i32) {
    %c0_i32 = arith.constant 0 : i32
    %c0_i32_0 = arith.constant 0 : i32
    %c0_i32_1 = arith.constant 0 : i32
    return %c0_i32, %c0_i32_0 : i32, i32
  }
  func.func @transform_5(%arg0: i32) -> (i32, i32) {
    %c0_i32 = arith.constant 0 : i32
    %c0_i32_0 = arith.constant 0 : i32
    return %arg0, %c0_i32 : i32, i32
  }
}

</mosaic_0001>

<llo_original>
// kernel: tpu_custom_call.1
$region0: #{tpu_custom_call.1}
  #allocation0 [shape = 'u32[]', space=smem, size = 0x4, offset = 0x4, fixed_abs, tag = 'smem constant byte address 0x4 - core index']
  #allocation1 [shape = 'u32[144,128]{1,0:T(1,128)}', space=vmem, size = 0x12000, scoped, tag = 'internal scratch']
  %s0 = inlined_call_operand.vmem [shape: f32[8,32], index: 0, kind: input, shape index: {}]
  %s1 = inlined_call_operand.vmem [shape: f32[3,128], index: 1, kind: input, shape index: {}]
  %s2 = inlined_call_operand.hbm [shape: bf16[32,128], index: 2, kind: input, shape index: {}]
  %s3 = inlined_call_operand.vmem [shape: bf16[128,128], index: 3, kind: input, shape index: {}]
  %s4 = inlined_call_operand.vmem [shape: bf16[128,1], index: 4, kind: input, shape index: {}]
  %s5 = inlined_call_operand.vmem [shape: f32[8,1], index: 5, kind: output, shape index: {}]
  %s6 = sld [smem:[#allocation0]]
  $region34: #{tpu_custom_call.1} parent=0
    _
  %s8 = ssub.s32 1, %s6
  %s9 = scalar_select 0, %s8, %s6
  $region1: #{tpu_custom_call.1} parent=0
    #allocation2 [shape = 'u8[8192]{0}', space=vmem, size = 0x2000, scoped, tag = 'input window, operand 2, single buffered']
    #allocation3 [shape = 's32[1]{0}', space=sflag, size = 0x4, scoped, tag = 'scoped memory for tpu_custom_call.1']
    %10 = vsyncpa [#allocation3], 0
    // Predicated region
    $region2: #{tpu_custom_call.1} parent=1 // pred_check
      _
    $region3: #{tpu_custom_call.1} parent=1 // pred_check_branch
      %12 = sbr.rel (0) target = $region5
    $region4: #{tpu_custom_call.1} parent=1 // pred_region
      _
    $region5: #{tpu_custom_call.1} parent=1 // pred_fallthru
      _
    // Predicated region
    $region6: #{tpu_custom_call.1} parent=1 // pred_check
      _
    $region7: #{tpu_custom_call.1} parent=1 // pred_check_branch
      %14 = sbr.rel (0) target = $region9
    $region8: #{tpu_custom_call.1} parent=1 // pred_region
      _
    $region9: #{tpu_custom_call.1} parent=1 // pred_fallthru
      _
    // Predicated region
    $region10: #{tpu_custom_call.1} parent=1 // pred_check
      _
    $region11: #{tpu_custom_call.1} parent=1 // pred_check_branch
      %16 = sbr.rel (0) target = $region13
    $region12: #{tpu_custom_call.1} parent=1 // pred_region
      %s18 = ssub.s32 256, 256
      %19 = vsyncadd [#allocation3], %s18
      %s20 = sshll.u32 [#allocation2], 4
      %s21 = int_to_ptr.vmem [resolvable:$true] %s20
      %26 = dma.hbm_to_vmem [thread:$0]  %s2, 256, %s21, [#allocation3], 64, 64, 4
    $region13: #{tpu_custom_call.1} parent=1 // pred_fallthru
      _
    // Predicated region
    $region14: #{tpu_custom_call.1} parent=1 // pred_check
      _
    $region15: #{tpu_custom_call.1} parent=1 // pred_check_branch
      %28 = sbr.rel (0) target = $region17
    $region16: #{tpu_custom_call.1} parent=1 // pred_region
      _
    $region17: #{tpu_custom_call.1} parent=1 // pred_fallthru
      _
    // Predicated region
    $region18: #{tpu_custom_call.1} parent=1 // pred_check
      _
    $region19: #{tpu_custom_call.1} parent=1 // pred_check_branch
      %30 = sbr.rel (0) target = $region21
    $region20: #{tpu_custom_call.1} parent=1 // pred_region
      _
    $region21: #{tpu_custom_call.1} parent=1 // pred_fallthru
      _
    // Predicated region
    $region22: #{tpu_custom_call.1} parent=1 // pred_check
      _
    $region23: #{tpu_custom_call.1} parent=1 // pred_check_branch
      %32 = sbr.rel (0) target = $region25
    $region24: #{tpu_custom_call.1} parent=1 // pred_region
      %33 = dma.done [#allocation3], 256
    $region25: #{tpu_custom_call.1} parent=1 // pred_fallthru
      _
    %v35 = vld [vmem:[%s0] sm:$0xff]
    %v36 = vld [vmem:[#allocation2] sm:$0xf]
    %v37 = vld [vmem:[#allocation2 + $0x4] sm:$0xf]
    %v38 = vld [vmem:[#allocation2 + $0x8] sm:$0xf]
    %v39 = vld [vmem:[#allocation2 + $0xc] sm:$0xf]
    %v40 = vld [vmem:[%s1] sm:$0x1]
    %v41 = vpack.c.bf16 %v35, %v35
    %v42 = vlaneseq
    %v43 = vshrl.u32 %v42, 7
    %v44 = vsub.s32 0, %v43
    %v45 = vrot.slane %v40, %v44
    %v50 = vunpack.c.l.b16 %v36
    %v51 = vunpack.c.l.b16 %v37
    %v52 = vunpack.c.l.b16 %v38
    %v53 = vunpack.c.l.b16 %v39
    %v54 = vpack.c.b16 %v51, %v50
    %v55 = vpack.c.b16 %v53, %v52
    %vm58 = vcmask 261120
    %v60 = vsel %vm58, %v41, 0
    %62 = vmatprep.subr.bf16.mxu0 0
    %63 = vmatpush1.bf16.msra.mxu0 %v54
    %64 = vmatprep.subr.bf16.mxu0 0
    %65 = vmatpush1.bf16.msra.mxu0 %v55
    %66 = vmatprep.subr.bf16.mxu0 0
    %67 = vmatpush1.bf16.msra.mxu0 0
    %68 = vmatprep.subr.bf16.mxu0 0
    %69 = vmatpush1.bf16.msra.mxu0 0
    %70 = vmatprep.subr.bf16.mxu0 0
    %71 = vmatpush1.bf16.msra.mxu0 0
    %72 = vmatprep.subr.bf16.mxu0 0
    %73 = vmatpush1.bf16.msra.mxu0 0
    %74 = vmatprep.subr.bf16.mxu0 0
    %75 = vmatpush1.bf16.msra.mxu0 0
    %76 = vmatprep.subr.bf16.mxu0 0
    %77 = vmatpush1.bf16.msra.mxu0 0
    %78 = vmatprep.subr.bf16.mxu0 0
    %79 = vmatpush1.bf16.msra.mxu0 0
    %80 = vmatprep.subr.bf16.mxu0 0
    %81 = vmatpush1.bf16.msra.mxu0 0
    %82 = vmatprep.subr.bf16.mxu0 0
    %83 = vmatpush1.bf16.msra.mxu0 0
    %84 = vmatprep.subr.bf16.mxu0 0
    %85 = vmatpush1.bf16.msra.mxu0 0
    %86 = vmatprep.subr.bf16.mxu0 0
    %87 = vmatpush1.bf16.msra.mxu0 0
    %88 = vmatprep.subr.bf16.mxu0 0
    %89 = vmatpush1.bf16.msra.mxu0 0
    %90 = vmatprep.subr.bf16.mxu0 0
    %91 = vmatpush1.bf16.msra.mxu0 0
    %92 = vmatprep.subr.bf16.mxu0 0
    %93 = vmatpush1.bf16.msra.mxu0 0
    %94 = vmatprep.mubr.bf16.mxu0 0
    %95 = vmatmul.mubr.bf16.gmra.mrb[0].mxu0 %v60
    %v96 = vpop.f32.mrb[0].mxu0
    %v97 = vadd.f32 %v45, %v96
    %v98 = vpop.f32.mrb[0].mxu0
    %v99 = vpop.f32.mrb[0].mxu0
    %v100 = vpop.f32.mrb[0].mxu0
    %101 = vdwg.mxu0
    %v102 = vmax.f32 %v97, 0.0
    %v103 = vld [vmem:[%s3] sm:$0xf]
    %v104 = vld [vmem:[%s3 + $0x4] sm:$0xf]
    %v105 = vld [vmem:[%s3 + $0x8] sm:$0xf]
    %v106 = vld [vmem:[%s3 + $0xc] sm:$0xf]
    %v107 = vld [vmem:[%s3 + $0x10] sm:$0xf]
    %v108 = vld [vmem:[%s3 + $0x14] sm:$0xf]
    %v109 = vld [vmem:[%s3 + $0x18] sm:$0xf]
    %v110 = vld [vmem:[%s3 + $0x1c] sm:$0xf]
    %v111 = vld [vmem:[%s3 + $0x20] sm:$0xf]
    %v112 = vld [vmem:[%s3 + $0x24] sm:$0xf]
    %v113 = vld [vmem:[%s3 + $0x28] sm:$0xf]
    %v114 = vld [vmem:[%s3 + $0x2c] sm:$0xf]
    %v115 = vld [vmem:[%s3 + $0x30] sm:$0xf]
    %v116 = vld [vmem:[%s3 + $0x34] sm:$0xf]
    %v117 = vld [vmem:[%s3 + $0x38] sm:$0xf]
    %v118 = vld [vmem:[%s3 + $0x3c] sm:$0xf]
    %v119 = vld [vmem:[%s1 + $0x1] sm:$0x1]
    %v120 = vpack.c.bf16 %v102, %v102
    %v121 = vlaneseq
    %v122 = vshrl.u32 %v121, 7
    %v123 = vsub.s32 0, %v122
    %v124 = vrot.slane %v119, %v123
    %v141 = vunpack.c.l.b16 %v103
    %v142 = vunpack.c.l.b16 %v104
    %v143 = vunpack.c.l.b16 %v105
    %v144 = vunpack.c.l.b16 %v106
    %v145 = vunpack.c.l.b16 %v107
    %v146 = vunpack.c.l.b16 %v108
    %v147 = vunpack.c.l.b16 %v109
    %v148 = vunpack.c.l.b16 %v110
    %v149 = vunpack.c.l.b16 %v111
    %v150 = vunpack.c.l.b16 %v112
    %v151 = vunpack.c.l.b16 %v113
    %v152 = vunpack.c.l.b16 %v114
    %v153 = vunpack.c.l.b16 %v115
    %v154 = vunpack.c.l.b16 %v116
    %v155 = vunpack.c.l.b16 %v117
    %v156 = vunpack.c.l.b16 %v118
    %v157 = vpack.c.b16 %v142, %v141
    %v158 = vpack.c.b16 %v144, %v143
    %v159 = vpack.c.b16 %v146, %v145
    %v160 = vpack.c.b16 %v148, %v147
    %v161 = vpack.c.b16 %v150, %v149
    %v162 = vpack.c.b16 %v152, %v151
    %v163 = vpack.c.b16 %v154, %v153
    %v164 = vpack.c.b16 %v156, %v155
    %173 = vmatprep.subr.bf16.mxu0 0
    %174 = vmatpush1.bf16.msra.mxu0 %v157
    %175 = vmatprep.subr.bf16.mxu0 0
    %176 = vmatpush1.bf16.msra.mxu0 %v158
    %177 = vmatprep.subr.bf16.mxu0 0
    %178 = vmatpush1.bf16.msra.mxu0 %v159
    %179 = vmatprep.subr.bf16.mxu0 0
    %180 = vmatpush1.bf16.msra.mxu0 %v160
    %181 = vmatprep.subr.bf16.mxu0 0
    %182 = vmatpush1.bf16.msra.mxu0 %v161
    %183 = vmatprep.subr.bf16.mxu0 0
    %184 = vmatpush1.bf16.msra.mxu0 %v162
    %185 = vmatprep.subr.bf16.mxu0 0
    %186 = vmatpush1.bf16.msra.mxu0 %v163
    %187 = vmatprep.subr.bf16.mxu0 0
    %188 = vmatpush1.bf16.msra.mxu0 %v164
    %189 = vmatprep.subr.bf16.mxu0 0
    %190 = vmatpush1.bf16.msra.mxu0 0
    %191 = vmatprep.subr.bf16.mxu0 0
    %192 = vmatpush1.bf16.msra.mxu0 0
    %193 = vmatprep.subr.bf16.mxu0 0
    %194 = vmatpush1.bf16.msra.mxu0 0
    %195 = vmatprep.subr.bf16.mxu0 0
    %196 = vmatpush1.bf16.msra.mxu0 0
    %197 = vmatprep.subr.bf16.mxu0 0
    %198 = vmatpush1.bf16.msra.mxu0 0
    %199 = vmatprep.subr.bf16.mxu0 0
    %200 = vmatpush1.bf16.msra.mxu0 0
    %201 = vmatprep.subr.bf16.mxu0 0
    %202 = vmatpush1.bf16.msra.mxu0 0
    %203 = vmatprep.subr.bf16.mxu0 0
    %204 = vmatpush1.bf16.msra.mxu0 0
    %205 = vmatprep.mubr.bf16.mxu0 0
    %206 = vmatmul.mubr.bf16.gmra.mrb[0].mxu0 %v120
    %v207 = vpop.f32.mrb[0].mxu0
    %v208 = vadd.f32 %v124, %v207
    %v209 = vpop.f32.mrb[0].mxu0
    %v210 = vpop.f32.mrb[0].mxu0
    %v211 = vpop.f32.mrb[0].mxu0
    %212 = vdwg.mxu0
    %v213 = vmax.f32 %v208, 0.0
    %v214 = vld [vmem:[%s4] sm:$0xf]
    %v215 = vld [vmem:[%s4 + $0x4] sm:$0xf]
    %v216 = vld [vmem:[%s4 + $0x8] sm:$0xf]
    %v217 = vld [vmem:[%s4 + $0xc] sm:$0xf]
    %v218 = vld [vmem:[%s4 + $0x10] sm:$0xf]
    %v219 = vld [vmem:[%s4 + $0x14] sm:$0xf]
    %v220 = vld [vmem:[%s4 + $0x18] sm:$0xf]
    %v221 = vld [vmem:[%s4 + $0x1c] sm:$0xf]
    %v222 = vld [vmem:[%s4 + $0x20] sm:$0xf]
    %v223 = vld [vmem:[%s4 + $0x24] sm:$0xf]
    %v224 = vld [vmem:[%s4 + $0x28] sm:$0xf]
    %v225 = vld [vmem:[%s4 + $0x2c] sm:$0xf]
    %v226 = vld [vmem:[%s4 + $0x30] sm:$0xf]
    %v227 = vld [vmem:[%s4 + $0x34] sm:$0xf]
    %v228 = vld [vmem:[%s4 + $0x38] sm:$0xf]
    %v229 = vld [vmem:[%s4 + $0x3c] sm:$0xf]
    %v230 = vld [vmem:[%s1 + $0x2] sm:$0x1]
    %v231 = vpack.c.bf16 %v213, %v213
    %v232 = vlaneseq
    %v233 = vshrl.u32 %v232, 7
    %v234 = vsub.s32 0, %v233
    %v235 = vrot.slane %v230, %v234
    %v252 = vunpack.c.l.b16 %v214
    %v253 = vunpack.c.l.b16 %v215
    %v254 = vunpack.c.l.b16 %v216
    %v255 = vunpack.c.l.b16 %v217
    %v256 = vunpack.c.l.b16 %v218
    %v257 = vunpack.c.l.b16 %v219
    %v258 = vunpack.c.l.b16 %v220
    %v259 = vunpack.c.l.b16 %v221
    %v260 = vunpack.c.l.b16 %v222
    %v261 = vunpack.c.l.b16 %v223
    %v262 = vunpack.c.l.b16 %v224
    %v263 = vunpack.c.l.b16 %v225
    %v264 = vunpack.c.l.b16 %v226
    %v265 = vunpack.c.l.b16 %v227
    %v266 = vunpack.c.l.b16 %v228
    %v267 = vunpack.c.l.b16 %v229
    %v268 = vpack.c.b16 %v253, %v252
    %v269 = vpack.c.b16 %v255, %v254
    %v270 = vpack.c.b16 %v257, %v256
    %v271 = vpack.c.b16 %v259, %v258
    %v272 = vpack.c.b16 %v261, %v260
    %v273 = vpack.c.b16 %v263, %v262
    %v274 = vpack.c.b16 %v265, %v264
    %v275 = vpack.c.b16 %v267, %v266
    %284 = vmatprep.subr.bf16.mxu0 0
    %285 = vmatpush1.bf16.msra.mxu0 %v268
    %286 = vmatprep.subr.bf16.mxu0 0
    %287 = vmatpush1.bf16.msra.mxu0 %v269
    %288 = vmatprep.subr.bf16.mxu0 0
    %289 = vmatpush1.bf16.msra.mxu0 %v270
    %290 = vmatprep.subr.bf16.mxu0 0
    %291 = vmatpush1.bf16.msra.mxu0 %v271
    %292 = vmatprep.subr.bf16.mxu0 0
    %293 = vmatpush1.bf16.msra.mxu0 %v272
    %294 = vmatprep.subr.bf16.mxu0 0
    %295 = vmatpush1.bf16.msra.mxu0 %v273
    %296 = vmatprep.subr.bf16.mxu0 0
    %297 = vmatpush1.bf16.msra.mxu0 %v274
    %298 = vmatprep.subr.bf16.mxu0 0
    %299 = vmatpush1.bf16.msra.mxu0 %v275
    %300 = vmatprep.subr.bf16.mxu0 0
    %301 = vmatpush1.bf16.msra.mxu0 0
    %302 = vmatprep.subr.bf16.mxu0 0
    %303 = vmatpush1.bf16.msra.mxu0 0
    %304 = vmatprep.subr.bf16.mxu0 0
    %305 = vmatpush1.bf16.msra.mxu0 0
    %306 = vmatprep.subr.bf16.mxu0 0
    %307 = vmatpush1.bf16.msra.mxu0 0
    %308 = vmatprep.subr.bf16.mxu0 0
    %309 = vmatpush1.bf16.msra.mxu0 0
    %310 = vmatprep.subr.bf16.mxu0 0
    %311 = vmatpush1.bf16.msra.mxu0 0
    %312 = vmatprep.subr.bf16.mxu0 0
    %313 = vmatpush1.bf16.msra.mxu0 0
    %314 = vmatprep.subr.bf16.mxu0 0
    %315 = vmatpush1.bf16.msra.mxu0 0
    %316 = vmatprep.mubr.bf16.mxu0 0
    %317 = vmatmul.mubr.bf16.gmra.mrb[0].mxu0 %v231
    %v318 = vpop.f32.mrb[0].mxu0
    %v319 = vadd.f32 %v235, %v318
    %v320 = vpop.f32.mrb[0].mxu0
    %v321 = vpop.f32.mrb[0].mxu0
    %v322 = vpop.f32.mrb[0].mxu0
    %323 = vdwg.mxu0
    %v324 = vxor.u32 %v319, 2147483648
    %v325 = vmul.f32 %v324, 1.442695
    %v326 = vpow.pop %v325
    %v327 = vadd.f32 %v326, 1.0
    %v328 = vrcp.pop %v327
    %v329 = vmul.f32 1.0, %v328
    %vm330 = vcmask 7168
    %331 = vst.msk [vmem:[%s5] sm:$0xff] %vm330, %v329
    // Predicated region
    $region26: #{tpu_custom_call.1} parent=1 // pred_check
      _
    $region27: #{tpu_custom_call.1} parent=1 // pred_check_branch
      %333 = sbr.rel (0) target = $region29
    $region28: #{tpu_custom_call.1} parent=1 // pred_region
      _
    $region29: #{tpu_custom_call.1} parent=1 // pred_fallthru
      _
    // Predicated region
    $region30: #{tpu_custom_call.1} parent=1 // pred_check
      _
    $region31: #{tpu_custom_call.1} parent=1 // pred_check_branch
      %335 = sbr.rel (0) target = $region33
    $region32: #{tpu_custom_call.1} parent=1 // pred_region
      _
    $region33: #{tpu_custom_call.1} parent=1 // pred_fallthru
      _
    %336 = vsyncpa [#allocation3], 1

</llo_original>
